<compile_context>
chip_gen: v6e
topology: v6e:2x2x1
jax: 0.10.0
libtpu: 0.0.40
codegen_flags: <defaults>
</compile_context>

<pallas_src>
import functools

import jax
import jax.numpy as jnp
from jax.experimental import pallas as pl
from jax.experimental.pallas import tpu as pltpu


def _poly_cutoff_kernel(r_ref, o_ref, *, inv_cutoff, p, c0, c1, c2):
    # Pure elementwise hot path on the VPU; compute in f32 regardless of I/O dtype.
    r = r_ref[...].astype(jnp.float32) * inv_cutoff   # r / cutoff_length
    r_p = r ** p                                       # static-int power -> multiply chain
    # 1 - c0*r^p + c1*r^(p+1) - c2*r^(p+2), Horner on the tail
    out = 1.0 + r_p * (-c0 + r * (c1 - c2 * r))
    o_ref[...] = out.astype(o_ref.dtype)


def _round_up(x, m):
    return (x + m - 1) // m * m


def _round_down(x, m):
    return x // m * m


def _cdiv(a, b):
    return (a + b - 1) // b


_LANE_CANDIDATES = (1024, 512, 256, 128)
_ROW_ALIGN = 16   # sublane multiple; covers bf16 (2 rows/sublane) and f32


def polynomial_cutoff(r, cutoff_length, poly_cut_p_value=6, *,
                      target_block_bytes=4 * 1024 * 1024):
    """r: (*, 1) float -> (*, 1) float, matching the PyTorch module."""
    p = int(poly_cut_p_value)
    c0 = (p + 1.0) * (p + 2.0) / 2.0
    c1 = p * (p + 2.0)
    c2 = p * (p + 1.0) / 2.0

    orig_shape = r.shape
    flat = r.reshape(-1)
    n = flat.shape[0]
    if n == 0:
        return flat.reshape(orig_shape)

    # Lane-dense 2D view.  Prefer a pad-free reshape: largest lane count in
    # {1024,512,256,128} dividing n (common case -> zero extra HBM passes).
    lanes = next((c for c in _LANE_CANDIDATES if n % c == 0), None)
    pad = 0
    if lanes is None:
        lanes = 128
        pad = (-n) % lanes
        # TODO(synk): fuse into the consumer kernel to also drop this rare-path pad.
        flat = jnp.pad(flat, (0, pad))
    rows = (n + pad) // lanes

    itemsize = jnp.dtype(r.dtype).itemsize
    max_block_rows = max(
        _ROW_ALIGN,
        _round_down((target_block_bytes // itemsize) // lanes, _ROW_ALIGN))

    if rows < 32:
        # Tiny input: single full-extent block (row dim equals full array dim).
        block_rows = rows
    else:
        # >= 4 grid steps: feeds both TensorCores on v7x and overlaps
        # writeback of step i with fetch of step i+1 on every generation.
        block_rows = min(max_block_rows, _round_up(_cdiv(rows, 4), _ROW_ALIGN))
    grid = (_cdiv(rows, block_rows),)   # partial last block handled by Pallas

    r2d = flat.reshape(rows, lanes)

    kernel = functools.partial(
        _poly_cutoff_kernel,
        inv_cutoff=float(1.0 / cutoff_length),   # plain floats -> immediates
        p=p, c0=float(c0), c1=float(c1), c2=float(c2))

    out2d = pl.pallas_call(
        kernel,
        out_shape=jax.ShapeDtypeStruct((rows, lanes), r.dtype),
        grid_spec=pltpu.PrefetchScalarGridSpec(
            num_scalar_prefetch=0,
            grid=grid,
            in_specs=[pl.BlockSpec((block_rows, lanes), lambda i: (i, 0))],
            out_specs=pl.BlockSpec((block_rows, lanes), lambda i: (i, 0)),
        ),
        compiler_params=pltpu.CompilerParams(
            dimension_semantics=("parallel",),       # shards grid across TCs on v7x
            vmem_limit_bytes=32 * 1024 * 1024,       # 4 MiB blocks x2 bufs x(in+out) fits
        ),
    )(r2d)

    out_flat = out2d.reshape(-1)
    if pad:
        out_flat = out_flat[:n]   # padded tail (=1.0 in-kernel) discarded here
    return out_flat.reshape(orig_shape)


def polynomial_cutoff_ref(r, cutoff_length, poly_cut_p_value=6):
    p = poly_cut_p_value
    c0 = (p + 1.0) * (p + 2.0) / 2.0
    c1 = p * (p + 2.0)
    c2 = p * (p + 1.0) / 2.0
    r = r / cutoff_length
    return (1.0 - c0 * jnp.power(r, p)
            + c1 * jnp.power(r, p + 1.0)
            - c2 * jnp.power(r, p + 2.0))


if __name__ == "__main__":
    key = jax.random.PRNGKey(0)
    cutoff_length = 4.5
    k1, k2, k3, k4 = jax.random.split(key, 4)

    # Case 1: lane-divisible edge count -> pad-free path, single tiny block.
    r1 = jax.random.uniform(k1, (2048, 1), dtype=jnp.float32) * cutoff_length
    o1 = jax.block_until_ready(polynomial_cutoff(r1, cutoff_length))
    assert o1.shape == r1.shape and o1.dtype == r1.dtype
    assert jnp.allclose(o1, polynomial_cutoff_ref(r1, cutoff_length),
                        atol=1e-5, rtol=1e-5), "mismatch (divisible)"

    # Case 2: ragged edge count -> minimal pad-to-128 fallback path.
    r2 = jax.random.uniform(k2, (1000, 1), dtype=jnp.float32) * cutoff_length
    o2 = jax.block_until_ready(polynomial_cutoff(r2, cutoff_length))
    assert o2.shape == r2.shape
    assert jnp.allclose(o2, polynomial_cutoff_ref(r2, cutoff_length),
                        atol=1e-5, rtol=1e-5), "mismatch (ragged)"

    # Case 3: larger count -> multi-step grid (>=4 blocks, pipelined / both TCs).
    r3 = jax.random.uniform(k3, (65536, 1), dtype=jnp.float32) * cutoff_length
    o3 = jax.block_until_ready(polynomial_cutoff(r3, cutoff_length))
    assert jnp.allclose(o3, polynomial_cutoff_ref(r3, cutoff_length),
                        atol=1e-5, rtol=1e-5), "mismatch (multi-block)"

    # Case 4: bf16 I/O path (f32 internal compute).
    r4 = (jax.random.uniform(k4, (16384, 1), dtype=jnp.float32)
          * cutoff_length).astype(jnp.bfloat16)
    o4 = jax.block_until_ready(polynomial_cutoff(r4, cutoff_length))
    ref4 = polynomial_cutoff_ref(r4.astype(jnp.float32), cutoff_length)
    assert o4.dtype == jnp.bfloat16 and o4.shape == r4.shape
    assert jnp.allclose(o4.astype(jnp.float32), ref4,
                        atol=1e-2, rtol=2e-2), "mismatch (bf16)"

    print("KERNEL_OK")
</pallas_src>

<mosaic_0001>
module attributes {stable_mosaic.version = 11 : i64} {
  func.func @_poly_cutoff_kernel(%arg0: i32, %arg1: memref<2x1024xf32, #tpu.memory_space<vmem>>, %arg2: memref<2x1024xf32, #tpu.memory_space<vmem>>) attributes {dimension_semantics = [#tpu.dimension_semantics<parallel>], iteration_bounds = array<i64: 1>, scalar_prefetch = 0 : i64, scratch_operands = 0 : i64, tpu.core_type = #tpu.core_type<tc>, window_params = [{transform_indices = @transform_0, window_bounds = array<i64: 2, 1024>}, {transform_indices = @transform_1, window_bounds = array<i64: 2, 1024>}]} {
    %c0 = arith.constant 0 : index
    %c0_0 = arith.constant 0 : index
    %0 = vector.load %arg1[%c0, %c0_0] : memref<2x1024xf32, #tpu.memory_space<vmem>>, vector<2x1024xf32>
    %cst = arith.constant 0.222222224 : f32
    %1 = vector.broadcast %cst : f32 to vector<2x1024xf32>
    %2 = arith.mulf %0, %1 : vector<2x1024xf32>
    %3 = arith.mulf %2, %2 : vector<2x1024xf32>
    %4 = arith.mulf %3, %3 : vector<2x1024xf32>
    %5 = arith.mulf %3, %4 : vector<2x1024xf32>
    %cst_1 = arith.constant 2.100000e+01 : f32
    %6 = vector.broadcast %cst_1 : f32 to vector<2x1024xf32>
    %7 = arith.mulf %6, %2 : vector<2x1024xf32>
    %cst_2 = arith.constant 4.800000e+01 : f32
    %8 = vector.broadcast %cst_2 : f32 to vector<2x1024xf32>
    %9 = arith.subf %8, %7 : vector<2x1024xf32>
    %10 = arith.mulf %2, %9 : vector<2x1024xf32>
    %cst_3 = arith.constant -2.800000e+01 : f32
    %11 = vector.broadcast %cst_3 : f32 to vector<2x1024xf32>
    %12 = arith.addf %11, %10 : vector<2x1024xf32>
    %13 = arith.mulf %5, %12 : vector<2x1024xf32>
    %cst_4 = arith.constant 1.000000e+00 : f32
    %14 = vector.broadcast %cst_4 : f32 to vector<2x1024xf32>
    %15 = arith.addf %14, %13 : vector<2x1024xf32>
    %c0_5 = arith.constant 0 : index
    %c0_6 = arith.constant 0 : index
    %16 = vector.load %arg2[%c0_5, %c0_6] : memref<2x1024xf32, #tpu.memory_space<vmem>>, vector<2x1024xf32>
    tpu.vector_store %arg2[%c0_5, %c0_6], %15 {strides = array<i32>} : memref<2x1024xf32, #tpu.memory_space<vmem>>, vector<2x1024xf32>,
    return
  }
  func.func @transform_0(%arg0: i32) -> (i32, i32) {
    %c0_i32 = arith.constant 0 : i32
    %c0_i32_0 = arith.constant 0 : i32
    return %arg0, %c0_i32 : i32, i32
  }
  func.func @transform_1(%arg0: i32) -> (i32, i32) {
    %c0_i32 = arith.constant 0 : i32
    %c0_i32_0 = arith.constant 0 : i32
    return %arg0, %c0_i32 : i32, i32
  }
}

</mosaic_0001>

<llo_original>
// kernel: tpu_custom_call.1
$region0: #{tpu_custom_call.1}
  #allocation0 [shape = 'u32[]', space=smem, size = 0x4, offset = 0x4, fixed_abs, tag = 'smem constant byte address 0x4 - core index']
  #allocation1 [shape = 'u32[144,128]{1,0:T(1,128)}', space=vmem, size = 0x12000, scoped, tag = 'internal scratch']
  %s0 = inlined_call_operand.hbm [shape: f32[2,1024], index: 0, kind: input, shape index: {}]
  %s1 = inlined_call_operand.hbm [shape: f32[2,1024], index: 1, kind: output, shape index: {}]
  %s2 = sld [smem:[#allocation0]]
  $region18: #{tpu_custom_call.1} parent=0
    _
  %s4 = ssub.s32 1, %s2
  %s5 = scalar_select 0, %s4, %s2
  $region1: #{tpu_custom_call.1} parent=0
    #allocation2 [shape = 'u8[8192]{0}', space=vmem, size = 0x2000, scoped, tag = 'input window, operand 0, single buffered']
    #allocation3 [shape = 's32[1]{0}', space=sflag, size = 0x4, scoped, tag = 'scoped memory for tpu_custom_call.1']
    #allocation4 [shape = 's32[1]{0}', space=sflag, size = 0x4, scoped, tag = 'scoped memory for tpu_custom_call.1']
    #allocation5 [shape = 'u8[8192]{0}', space=vmem, size = 0x2000, scoped, tag = 'output window, operand 0, single buffered']
    %6 = vsyncpa [#allocation3], 0
    %7 = vsyncpa [#allocation4], 0
    // Predicated region
    $region2: #{tpu_custom_call.1} parent=1 // pred_check
      _
    $region3: #{tpu_custom_call.1} parent=1 // pred_check_branch
      %9 = sbr.rel (0) target = $region5
    $region4: #{tpu_custom_call.1} parent=1 // pred_region
      %s11 = ssub.s32 256, 256
      %12 = vsyncadd [#allocation3], %s11
      %s14 = sshll.u32 [#allocation2], 4
      %s15 = int_to_ptr.vmem [resolvable:$true] %s14
      %17 = dma.hbm_to_vmem [thread:$0]  %s0, 256, %s15, [#allocation3]
    $region5: #{tpu_custom_call.1} parent=1 // pred_fallthru
      _
    // Predicated region
    $region6: #{tpu_custom_call.1} parent=1 // pred_check
      _
    $region7: #{tpu_custom_call.1} parent=1 // pred_check_branch
      %19 = sbr.rel (0) target = $region9
    $region8: #{tpu_custom_call.1} parent=1 // pred_region
      %20 = dma.done [#allocation3], 256
    $region9: #{tpu_custom_call.1} parent=1 // pred_fallthru
      _
    %v21 = vld [vmem:[#allocation2] sm:$0xff]
    %v22 = vld [vmem:[#allocation2 + $0x8] sm:$0xff]
    %v23 = vmul.f32 %v21, 0.22222222
    %v24 = vmul.f32 %v22, 0.22222222
    %v25 = vmul.f32 %v23, %v23
    %v26 = vmul.f32 %v24, %v24
    %v27 = vmul.f32 %v25, %v25
    %v28 = vmul.f32 %v26, %v26
    %v29 = vmul.f32 %v25, %v27
    %v30 = vmul.f32 %v26, %v28
    %v31 = vmul.f32 %v23, 21.0
    %v32 = vmul.f32 %v24, 21.0
    %v33 = vsub.f32 48.0, %v31
    %v34 = vsub.f32 48.0, %v32
    %v35 = vmul.f32 %v23, %v33
    %v36 = vmul.f32 %v24, %v34
    %v37 = vadd.f32 %v35, -28.0
    %v38 = vadd.f32 %v36, -28.0
    %v39 = vmul.f32 %v29, %v37
    %v40 = vmul.f32 %v30, %v38
    %v41 = vadd.f32 %v39, 1.0
    %v42 = vadd.f32 %v40, 1.0
    %43 = vst [vmem:[#allocation5] sm:$0xff] %v41
    %44 = vst [vmem:[#allocation5 + $0x8] sm:$0xff] %v42
    // Predicated region
    $region10: #{tpu_custom_call.1} parent=1 // pred_check
      _
    $region11: #{tpu_custom_call.1} parent=1 // pred_check_branch
      %46 = sbr.rel (0) target = $region13
    $region12: #{tpu_custom_call.1} parent=1 // pred_region
      %s48 = ssub.s32 256, 256
      %49 = vsyncadd [#allocation4], %s48
      %s51 = sshll.u32 [#allocation5], 4
      %s52 = int_to_ptr.vmem [resolvable:$true] %s51
      %54 = dma.vmem_to_hbm [thread:$0]  %s52, 256, %s1, [#allocation4]
    $region13: #{tpu_custom_call.1} parent=1 // pred_fallthru
      _
    // Predicated region
    $region14: #{tpu_custom_call.1} parent=1 // pred_check
      _
    $region15: #{tpu_custom_call.1} parent=1 // pred_check_branch
      %56 = sbr.rel (0) target = $region17
    $region16: #{tpu_custom_call.1} parent=1 // pred_region
      %57 = dma.done [#allocation4], 256
    $region17: #{tpu_custom_call.1} parent=1 // pred_fallthru
      _
    %58 = vsyncpa [#allocation3], 1
    %59 = vsyncpa [#allocation4], 1

</llo_original>
